<compile_context>
chip_gen: v6e
topology: v6e:2x2x1
jax: 0.10.0
libtpu: 0.0.40
codegen_flags: <defaults>
</compile_context>

<pallas_src>
import functools

import jax
import jax.numpy as jnp
from jax import lax
from jax.experimental import pallas as pl
from jax.experimental.pallas import tpu as pltpu

_LANES = 128
_SUBLANES = 8


def _dice_partial_kernel(o_ref, t_ref, inter_ref, sum_ref, *,
                         rows_tile, chunks_per_split, valid_rows, mask_tail):
    """Accumulate (8,128) partial sums of o*t and o+t for one (b, split)."""
    c = pl.program_id(2)

    @pl.when(c == 0)
    def _():
        inter_ref[...] = jnp.zeros_like(inter_ref)
        sum_ref[...] = jnp.zeros_like(sum_ref)

    o = o_ref[...].astype(jnp.float32)          # (rows_tile, 128)
    t = t_ref[...].astype(jnp.float32)

    prod = o * t
    both = o + t

    if mask_tail:
        # Zero out rows past the valid data (out-of-bounds block reads return
        # unspecified data).  Pure VALU work; only compiled when needed.
        g = pl.program_id(1) * chunks_per_split + c        # logical chunk
        row_ids = g * rows_tile + lax.broadcasted_iota(
            jnp.int32, (rows_tile, 1), 0)
        keep = row_ids < valid_rows
        prod = jnp.where(keep, prod, 0.0)
        both = jnp.where(keep, both, 0.0)

    # Layout-free fold (rows_tile,128) -> (8,128): VALU adds only.
    inter_ref[...] += jnp.sum(
        prod.reshape(rows_tile // _SUBLANES, _SUBLANES, _LANES), axis=0)
    sum_ref[...] += jnp.sum(
        both.reshape(rows_tile // _SUBLANES, _SUBLANES, _LANES), axis=0)


def _round_up(x, m):
    return -(-x // m) * m


def _sublane_pack(dtype):
    # f32 -> 8, bf16 -> 16, int8/fp8 -> 32 sublane packing.
    return max(_SUBLANES, 32 // jnp.dtype(dtype).itemsize)


def dice_loss(output, target, eps=1.0, rows_tile=4096, n_splits=None):
    """-mean(log((2*sum(o*t)+eps)/(sum(o)+sum(t)+eps))) over the batch.

    Inputs are streamed at their native dtype (pass bf16 / int8 masks directly
    for a near-linear bandwidth win); all math is done in f32 in-kernel.
    """
    assert output.shape == target.shape
    batch_size = output.shape[0]
    n = 1
    for d in output.shape[1:]:
        n *= d

    o2 = output.reshape(batch_size, n)
    t2 = target.reshape(batch_size, n)

    # Lane-dense layout (B, s, 128).  Pad only when n is not a multiple of 128
    # (zeros are sum-neutral); all other raggedness is masked in-kernel.
    n128 = _round_up(n, _LANES)
    if n128 != n:
        # TODO(synk): this still copies the inputs once when n % 128 != 0; the
        # <=127-element tail could instead be summed in plain jnp and folded in.
        o2 = jnp.pad(o2, ((0, 0), (0, n128 - n)))
        t2 = jnp.pad(t2, ((0, 0), (0, n128 - n)))
    s = n128 // _LANES                               # valid rows of 128 lanes
    o3 = o2.reshape(batch_size, s, _LANES)
    t3 = t2.reshape(batch_size, s, _LANES)

    # Tile rows: multiple of the strictest sublane packing among input dtypes.
    pack = max(_sublane_pack(output.dtype), _sublane_pack(target.dtype))
    rows_tile = max(pack, min(_round_up(int(rows_tile), pack),
                              _round_up(s, pack)))
    total_chunks = pl.cdiv(s, rows_tile)

    if n_splits is None:
        # Split the reduction so both v7x TensorCores are busy at small batch.
        n_splits = 2 if (batch_size < 8 and total_chunks >= 2) else 1
    n_splits = max(1, min(int(n_splits), total_chunks))
    chunks_per_split = pl.cdiv(total_chunks, n_splits)

    # Row mask needed iff the grid covers more rows than exist.
    mask_tail = (n_splits * chunks_per_split * rows_tile) > s
    last_chunk = total_chunks - 1

    def in_map(b, p, c):
        # Clamp the DMA source for overshoot chunks (their rows get masked).
        g = jnp.minimum(p * chunks_per_split + c, last_chunk)
        return (b, g, 0)

    kernel = functools.partial(
        _dice_partial_kernel,
        rows_tile=rows_tile,
        chunks_per_split=chunks_per_split,
        valid_rows=s,
        mask_tail=mask_tail)

    itemsize = (jnp.dtype(output.dtype).itemsize
                + jnp.dtype(target.dtype).itemsize)
    step_bytes = rows_tile * _LANES * itemsize        # both inputs, one buffer
    vmem_limit = int(min(64 << 20, max(16 << 20, 2 * step_bytes + (8 << 20))))

    cost = pl.CostEstimate(
        flops=int(3 * batch_size * s * _LANES),
        transcendentals=0,
        bytes_accessed=int(batch_size * s * _LANES * itemsize))

    out_struct = jax.ShapeDtypeStruct(
        (batch_size, n_splits, _SUBLANES, _LANES), jnp.float32)
    out_spec = pl.BlockSpec((None, None, _SUBLANES, _LANES),
                            lambda b, p, c: (b, p, 0, 0))

    inter_parts, sum_parts = pl.pallas_call(
        kernel,
        out_shape=(out_struct, out_struct),
        grid_spec=pltpu.PrefetchScalarGridSpec(
            num_scalar_prefetch=0,
            grid=(batch_size, n_splits, chunks_per_split),
            in_specs=[
                pl.BlockSpec((None, rows_tile, _LANES), in_map),
                pl.BlockSpec((None, rows_tile, _LANES), in_map),
            ],
            out_specs=[out_spec, out_spec],
        ),
        compiler_params=pltpu.CompilerParams(
            dimension_semantics=("parallel", "parallel", "arbitrary"),
            vmem_limit_bytes=vmem_limit,
        ),
        cost_estimate=cost,
    )(o3, t3)

    intersection = jnp.sum(inter_parts, axis=(1, 2, 3))   # (B,)
    union = jnp.sum(sum_parts, axis=(1, 2, 3))             # (B,)
    dice = (2.0 * intersection + float(eps)) / (union + float(eps))
    return -jnp.mean(jnp.log(dice))


def dice_loss_ref(output, target, eps=1.0):
    b = output.shape[0]
    o = output.reshape(b, -1).astype(jnp.float32)
    t = target.reshape(b, -1).astype(jnp.float32)
    inter = jnp.sum(o * t, axis=1)
    union = jnp.sum(o, axis=1) + jnp.sum(t, axis=1)
    loss = (2.0 * inter + eps) / (union + eps)
    return -jnp.mean(jnp.log(loss))


if __name__ == "__main__":
    key = jax.random.PRNGKey(0)
    k1, k2, k3, k4, k5, k6 = jax.random.split(key, 6)

    # --- Primary check: f32, lane-aligned (no pad, no mask) ------------------
    B, C, H, W = 2, 4, 16, 16
    output = jax.nn.sigmoid(jax.random.normal(k1, (B, C, H, W), dtype=jnp.float32))
    target = (jax.random.uniform(k2, (B, C, H, W)) > 0.5).astype(jnp.float32)
    loss = dice_loss(output, target, eps=1.0)
    jax.block_until_ready(loss)
    ref = dice_loss_ref(output, target, eps=1.0)
    assert jnp.allclose(loss, ref, rtol=1e-5, atol=1e-5), (loss, ref)

    # --- Ragged check: n % 128 != 0 exercises minimal pad + row mask ---------
    o_r = jax.nn.sigmoid(jax.random.normal(k3, (2, 3, 10, 10), dtype=jnp.float32))
    t_r = (jax.random.uniform(k4, (2, 3, 10, 10)) > 0.5).astype(jnp.float32)
    loss_r = dice_loss(o_r, t_r, eps=1.0)
    ref_r = dice_loss_ref(o_r, t_r, eps=1.0)
    assert jnp.allclose(loss_r, ref_r, rtol=1e-5, atol=1e-5), (loss_r, ref_r)

    # --- bf16 streaming + split-reduction + clamped overshoot chunks ---------
    o_b = jax.nn.sigmoid(
        jax.random.normal(k5, (2, 4, 64, 64), dtype=jnp.float32)).astype(jnp.bfloat16)
    t_b = (jax.random.uniform(k6, (2, 4, 64, 64)) > 0.5).astype(jnp.bfloat16)
    loss_b = dice_loss(o_b, t_b, eps=1.0, rows_tile=48)  # forces 3 chunks, 2 splits
    ref_b = dice_loss_ref(o_b, t_b, eps=1.0)
    assert jnp.allclose(loss_b, ref_b, rtol=1e-4, atol=1e-4), (loss_b, ref_b)

    jax.block_until_ready((loss, loss_r, loss_b))
    print("KERNEL_OK")
</pallas_src>

<mosaic_0001>
module attributes {stable_mosaic.version = 11 : i64} {
  func.func @_dice_partial_kernel(%arg0: i32, %arg1: i32, %arg2: i32, %arg3: memref<1x8x128xf32, #tpu.memory_space<vmem>>, %arg4: memref<1x8x128xf32, #tpu.memory_space<vmem>>, %arg5: memref<1x1x8x128xf32, #tpu.memory_space<vmem>>, %arg6: memref<1x1x8x128xf32, #tpu.memory_space<vmem>>) attributes {dimension_semantics = [#tpu.dimension_semantics<parallel>, #tpu.dimension_semantics<parallel>, #tpu.dimension_semantics<arbitrary>], iteration_bounds = array<i64: 2, 1, 1>, scalar_prefetch = 0 : i64, scratch_operands = 0 : i64, tpu.core_type = #tpu.core_type<tc>, window_params = [{transform_indices = @transform_0, window_bounds = array<i64: 1, 8, 128>}, {transform_indices = @transform_1, window_bounds = array<i64: 1, 8, 128>}, {transform_indices = @transform_2, window_bounds = array<i64: 1, 1, 8, 128>}, {transform_indices = @transform_3, window_bounds = array<i64: 1, 1, 8, 128>}]} {
    %c0_i32 = arith.constant 0 : i32
    %0 = arith.cmpi eq, %arg2, %c0_i32 : i32
    %1 = arith.extui %0 : i1 to i32
    %c0_i32_0 = arith.constant 0 : i32
    %2 = arith.cmpi ne, %1, %c0_i32_0 : i32
    scf.if %2 {
      %cst_23 = arith.constant 0.000000e+00 : f32
      %25 = vector.broadcast %cst_23 : f32 to vector<8x128xf32>
      %c0_24 = arith.constant 0 : index
      %c0_25 = arith.constant 0 : index
      %c0_26 = arith.constant 0 : index
      %c0_27 = arith.constant 0 : index
      %26 = vector.load %arg5[%c0_24, %c0_25, %c0_26, %c0_27] : memref<1x1x8x128xf32, #tpu.memory_space<vmem>>, vector<1x1x8x128xf32>
      %27 = vector.shape_cast %26 : vector<1x1x8x128xf32> to vector<8x128xf32>
      %28 = vector.shape_cast %25 : vector<8x128xf32> to vector<1x1x8x128xf32>
      tpu.vector_store %arg5[%c0_24, %c0_25, %c0_26, %c0_27], %28 {strides = array<i32>} : memref<1x1x8x128xf32, #tpu.memory_space<vmem>>, vector<1x1x8x128xf32>,
      %cst_28 = arith.constant 0.000000e+00 : f32
      %29 = vector.broadcast %cst_28 : f32 to vector<8x128xf32>
      %c0_29 = arith.constant 0 : index
      %c0_30 = arith.constant 0 : index
      %c0_31 = arith.constant 0 : index
      %c0_32 = arith.constant 0 : index
      %30 = vector.load %arg6[%c0_29, %c0_30, %c0_31, %c0_32] : memref<1x1x8x128xf32, #tpu.memory_space<vmem>>, vector<1x1x8x128xf32>
      %31 = vector.shape_cast %30 : vector<1x1x8x128xf32> to vector<8x128xf32>
      %32 = vector.shape_cast %29 : vector<8x128xf32> to vector<1x1x8x128xf32>
      tpu.vector_store %arg6[%c0_29, %c0_30, %c0_31, %c0_32], %32 {strides = array<i32>} : memref<1x1x8x128xf32, #tpu.memory_space<vmem>>, vector<1x1x8x128xf32>,
    } else {
    }
    %c0 = arith.constant 0 : index
    %c0_1 = arith.constant 0 : index
    %c0_2 = arith.constant 0 : index
    %3 = vector.load %arg3[%c0, %c0_1, %c0_2] : memref<1x8x128xf32, #tpu.memory_space<vmem>>, vector<1x8x128xf32>
    %4 = vector.shape_cast %3 : vector<1x8x128xf32> to vector<8x128xf32>
    %c0_3 = arith.constant 0 : index
    %c0_4 = arith.constant 0 : index
    %c0_5 = arith.constant 0 : index
    %5 = vector.load %arg4[%c0_3, %c0_4, %c0_5] : memref<1x8x128xf32, #tpu.memory_space<vmem>>, vector<1x8x128xf32>
    %6 = vector.shape_cast %5 : vector<1x8x128xf32> to vector<8x128xf32>
    %7 = arith.mulf %4, %6 : vector<8x128xf32>
    %8 = arith.addf %4, %6 : vector<8x128xf32>
    %c0_6 = arith.constant 0 : index
    %c0_7 = arith.constant 0 : index
    %c0_8 = arith.constant 0 : index
    %c0_9 = arith.constant 0 : index
    %9 = vector.load %arg5[%c0_6, %c0_7, %c0_8, %c0_9] : memref<1x1x8x128xf32, #tpu.memory_space<vmem>>, vector<1x1x8x128xf32>
    %10 = vector.shape_cast %9 : vector<1x1x8x128xf32> to vector<8x128xf32>
    %11 = vector.shape_cast %7 : vector<8x128xf32> to vector<1x8x128xf32>
    %cst = arith.constant dense<0.000000e+00> : vector<8x128xf32>
    %12 = vector.multi_reduction <add>, %11, %cst [0] : vector<1x8x128xf32> to vector<8x128xf32>
    %13 = arith.addf %10, %12 : vector<8x128xf32>
    %c0_10 = arith.constant 0 : index
    %c0_11 = arith.constant 0 : index
    %c0_12 = arith.constant 0 : index
    %c0_13 = arith.constant 0 : index
    %14 = vector.load %arg5[%c0_10, %c0_11, %c0_12, %c0_13] : memref<1x1x8x128xf32, #tpu.memory_space<vmem>>, vector<1x1x8x128xf32>
    %15 = vector.shape_cast %14 : vector<1x1x8x128xf32> to vector<8x128xf32>
    %16 = vector.shape_cast %13 : vector<8x128xf32> to vector<1x1x8x128xf32>
    tpu.vector_store %arg5[%c0_10, %c0_11, %c0_12, %c0_13], %16 {strides = array<i32>} : memref<1x1x8x128xf32, #tpu.memory_space<vmem>>, vector<1x1x8x128xf32>,
    %c0_14 = arith.constant 0 : index
    %c0_15 = arith.constant 0 : index
    %c0_16 = arith.constant 0 : index
    %c0_17 = arith.constant 0 : index
    %17 = vector.load %arg6[%c0_14, %c0_15, %c0_16, %c0_17] : memref<1x1x8x128xf32, #tpu.memory_space<vmem>>, vector<1x1x8x128xf32>
    %18 = vector.shape_cast %17 : vector<1x1x8x128xf32> to vector<8x128xf32>
    %19 = vector.shape_cast %8 : vector<8x128xf32> to vector<1x8x128xf32>
    %cst_18 = arith.constant dense<0.000000e+00> : vector<8x128xf32>
    %20 = vector.multi_reduction <add>, %19, %cst_18 [0] : vector<1x8x128xf32> to vector<8x128xf32>
    %21 = arith.addf %18, %20 : vector<8x128xf32>
    %c0_19 = arith.constant 0 : index
    %c0_20 = arith.constant 0 : index
    %c0_21 = arith.constant 0 : index
    %c0_22 = arith.constant 0 : index
    %22 = vector.load %arg6[%c0_19, %c0_20, %c0_21, %c0_22] : memref<1x1x8x128xf32, #tpu.memory_space<vmem>>, vector<1x1x8x128xf32>
    %23 = vector.shape_cast %22 : vector<1x1x8x128xf32> to vector<8x128xf32>
    %24 = vector.shape_cast %21 : vector<8x128xf32> to vector<1x1x8x128xf32>
    tpu.vector_store %arg6[%c0_19, %c0_20, %c0_21, %c0_22], %24 {strides = array<i32>} : memref<1x1x8x128xf32, #tpu.memory_space<vmem>>, vector<1x1x8x128xf32>,
    return
  }
  func.func @transform_0(%arg0: i32, %arg1: i32, %arg2: i32) -> (i32, i32, i32) {
    %c1_i32 = arith.constant 1 : i32
    %0 = arith.muli %arg1, %c1_i32 : i32
    %1 = arith.addi %0, %arg2 : i32
    %c0_i32 = arith.constant 0 : i32
    %2 = arith.minsi %1, %c0_i32 : i32
    %c0_i32_0 = arith.constant 0 : i32
    %c0_i32_1 = arith.constant 0 : i32
    return %arg0, %2, %c0_i32_0 : i32, i32, i32
  }
  func.func @transform_1(%arg0: i32, %arg1: i32, %arg2: i32) -> (i32, i32, i32) {
    %c1_i32 = arith.constant 1 : i32
    %0 = arith.muli %arg1, %c1_i32 : i32
    %1 = arith.addi %0, %arg2 : i32
    %c0_i32 = arith.constant 0 : i32
    %2 = arith.minsi %1, %c0_i32 : i32
    %c0_i32_0 = arith.constant 0 : i32
    %c0_i32_1 = arith.constant 0 : i32
    return %arg0, %2, %c0_i32_0 : i32, i32, i32
  }
  func.func @transform_2(%arg0: i32, %arg1: i32, %arg2: i32) -> (i32, i32, i32, i32) {
    %c0_i32 = arith.constant 0 : i32
    %c0_i32_0 = arith.constant 0 : i32
    %c0_i32_1 = arith.constant 0 : i32
    return %arg0, %arg1, %c0_i32, %c0_i32_0 : i32, i32, i32, i32
  }
  func.func @transform_3(%arg0: i32, %arg1: i32, %arg2: i32) -> (i32, i32, i32, i32) {
    %c0_i32 = arith.constant 0 : i32
    %c0_i32_0 = arith.constant 0 : i32
    %c0_i32_1 = arith.constant 0 : i32
    return %arg0, %arg1, %c0_i32, %c0_i32_0 : i32, i32, i32, i32
  }
}

</mosaic_0001>

<llo_original>
// kernel: tpu_custom_call.1
$region0: #{tpu_custom_call.1}
  #allocation0 [shape = 'u32[]', space=smem, size = 0x4, offset = 0x4, fixed_abs, tag = 'smem constant byte address 0x4 - core index']
  #allocation1 [shape = 'u32[144,128]{1,0:T(1,128)}', space=vmem, size = 0x12000, scoped, tag = 'internal scratch']
  %s0 = inlined_call_operand.hbm [shape: f32[2,8,128], index: 0, kind: input, shape index: {}]
  %s1 = inlined_call_operand.hbm [shape: f32[2,8,128], index: 1, kind: input, shape index: {}]
  %s2 = inlined_call_operand.hbm [shape: f32[2,1,8,128], index: 2, kind: output, shape index: {0}]
  %s3 = inlined_call_operand.hbm [shape: f32[2,1,8,128], index: 3, kind: output, shape index: {1}]
  %4 = xla_tuple %s2, %s3
  %s5 = sld [smem:[#allocation0]]
  $region61: #{tpu_custom_call.1} parent=0
    _
  %s7 = ssub.s32 1, %s5
  %s8 = scalar_select 0, %s7, %s5
  $region1: #{tpu_custom_call.1} parent=0
    #allocation2 [shape = 'u8[8192]{0}', space=vmem, size = 0x2000, scoped, tag = 'input window, operand 0']
    #allocation3 [shape = 's32[2]{0}', space=sflag, size = 0x8, scoped, tag = 'scoped memory for tpu_custom_call.1']
    #allocation4 [shape = 's32[2]{0}', space=sflag, size = 0x8, scoped, tag = 'scoped memory for tpu_custom_call.1']
    #allocation5 [shape = 'u8[8192]{0}', space=vmem, size = 0x2000, scoped, tag = 'input window, operand 1']
    #allocation6 [shape = 's32[2]{0}', space=sflag, size = 0x8, scoped, tag = 'scoped memory for tpu_custom_call.1']
    #allocation7 [shape = 'u8[8192]{0}', space=vmem, size = 0x2000, scoped, tag = 'output window, operand 0']
    #allocation8 [shape = 'u8[8192]{0}', space=vmem, size = 0x2000, scoped, tag = 'output window, operand 1']
    #allocation9 [shape = 's32[2]{0}', space=sflag, size = 0x8, scoped, tag = 'scoped memory for tpu_custom_call.1']
    %9 = vsyncpa [#allocation3], 0
    %s10 = scalar_lea.sflag [#allocation3], 1
    %11 = vsyncpa %s10, 0
    %12 = vsyncpa [#allocation6], 0
    %s13 = scalar_lea.sflag [#allocation6], 1
    %14 = vsyncpa %s13, 0
    %15 = vsyncpa [#allocation4], 0
    %s16 = scalar_lea.sflag [#allocation4], 1
    %17 = vsyncpa %s16, 0
    %18 = vsyncpa [#allocation9], 0
    %s19 = scalar_lea.sflag [#allocation9], 1
    %20 = vsyncpa %s19, 0
    loop: start=0, step=1, limit=4
    $region2: #{tpu_custom_call.1} parent=1 // loop_pre_header
      _
    $region3: #{tpu_custom_call.1} parent=1 // loop_header
      %s22 = sphi 0, %s26
      %p23 = scmp.ge.s32.totalorder %s22, 4
      %s29 = sphi 0, %s48
      %s30 = sphi 0, %s44
      %s31 = sphi 0, %s40
      %s32 = sphi 0, %s29
      %s33 = sphi 0, %s30
      %s34 = sphi 0, %s31
      %s35 = sphi 0, %s32
      %s36 = sphi 0, %s33
      %s37 = sphi 0, %s34
      %s59 = sphi 0, %s61
      %s62 = sphi 0, %s59
      %s63 = sphi 0, %s62
      %s79 = sphi 0, %s63
      %s93 = sphi 0, %s95
      %s96 = sphi 0, %s93
      %s97 = sphi 0, %s96
      %s113 = sphi 0, %s97
      %s121 = sphi 0, %s123
      %s124 = sphi 0, %s121
      %s125 = sphi 0, %s124
      %s141 = sphi 0, %s125
      %s149 = sphi 0, %s151
      %s152 = sphi 0, %s149
      %s153 = sphi 0, %s152
      %s169 = sphi 0, %s153
    $region4: #{tpu_custom_call.1} parent=1 // loop_header_branch
      %25 = sbr.rel (%p23) target = $region8
    $region5: #{tpu_custom_call.1} parent=1 // loop_body
      %s27 = ssub.s32 %s22, 1
      %s28 = ssub.s32 %s22, 2
      %s38 = sadd.s32 1, %s31
      %p39 = scmp.ge.s32.totalorder %s38, 1
      %s40 = scalar_select %p39, 0, %s38
      %s41 = sadd.s32 1, %s30
      %s42 = scalar_select %p39, %s41, %s30
      %p43 = scmp.ge.s32.totalorder %s42, 1
      %s44 = scalar_select %p43, 0, %s42
      %s45 = sadd.s32 1, %s29
      %s46 = scalar_select %p43, %s45, %s29
      %p47 = scmp.ge.s32.totalorder %s46, 2
      %s48 = scalar_select %p47, 0, %s46
      %s49 = sadd.s32 %s30, %s31
      %p50 = scmp.lt.s32.totalorder %s49, 0
      %s51 = scalar_select %p50, %s49, 0
      %s52 = sadd.s32 %s44, %s40
      %p53 = scmp.lt.s32.totalorder %s52, 0
      %s54 = scalar_select %p53, %s52, 0
      %s55 = ssub.s32 %s29, %s48
      %s56 = ssub.s32 %s51, %s54
      %s57 = sor.u32 %s55, %s56
      %p58 = scmp.eq.s32.totalorder %s57, 0
      %s60 = sadd.s32 %s59, 1
      %s61 = scalar_select %p58, %s59, %s60
      %p64 = pneg %p58
      %p65 = scmp.eq.s32.totalorder %s22, 1
      %p66 = por %p64, %p65
      %p67 = scmp.ne.s32.totalorder %s59, %s62
      %p68 = scmp.eq.s32.totalorder %s22, 0
      %p69 = por %p67, %p68
      %p70 = scmp.ne.s32.totalorder %s59, %s62
      %p71 = scmp.eq.s32.totalorder %s27, 1
      %p72 = por %p70, %p71
      %p73 = scmp.ne.s32.totalorder %s62, %s63
      %p74 = scmp.eq.s32.totalorder %s27, 0
      %p75 = por %p73, %p74
      %p76 = scmp.ne.s32.totalorder %s62, %s63
      %p77 = scmp.eq.s32.totalorder %s28, 1
      %p78 = por %p76, %p77
      %p80 = scmp.ne.s32.totalorder %s63, %s79
      %p81 = scmp.eq.s32.totalorder %s28, 0
      %p82 = por %p80, %p81
      %s83 = sadd.s32 %s30, %s31
      %p84 = scmp.lt.s32.totalorder %s83, 0
      %s85 = scalar_select %p84, %s83, 0
      %s86 = sadd.s32 %s44, %s40
      %p87 = scmp.lt.s32.totalorder %s86, 0
      %s88 = scalar_select %p87, %s86, 0
      %s89 = ssub.s32 %s29, %s48
      %s90 = ssub.s32 %s85, %s88
      %s91 = sor.u32 %s89, %s90
      %p92 = scmp.eq.s32.totalorder %s91, 0
      %s94 = sadd.s32 %s93, 1
      %s95 = scalar_select %p92, %s93, %s94
      %p98 = pneg %p92
      %p99 = scmp.eq.s32.totalorder %s22, 1
      %p100 = por %p98, %p99
      %p101 = scmp.ne.s32.totalorder %s93, %s96
      %p102 = scmp.eq.s32.totalorder %s22, 0
      %p103 = por %p101, %p102
      %p104 = scmp.ne.s32.totalorder %s93, %s96
      %p105 = scmp.eq.s32.totalorder %s27, 1
      %p106 = por %p104, %p105
      %p107 = scmp.ne.s32.totalorder %s96, %s97
      %p108 = scmp.eq.s32.totalorder %s27, 0
      %p109 = por %p107, %p108
      %p110 = scmp.ne.s32.totalorder %s96, %s97
      %p111 = scmp.eq.s32.totalorder %s28, 1
      %p112 = por %p110, %p111
      %p114 = scmp.ne.s32.totalorder %s97, %s113
      %p115 = scmp.eq.s32.totalorder %s28, 0
      %p116 = por %p114, %p115
      %s117 = ssub.s32 %s29, %s48
      %s118 = ssub.s32 %s30, %s44
      %s119 = sor.u32 %s117, %s118
      %p120 = scmp.eq.s32.totalorder %s119, 0
      %s122 = sadd.s32 %s121, 1
      %s123 = scalar_select %p120, %s121, %s122
      %p126 = pneg %p120
      %p127 = scmp.eq.s32.totalorder %s22, 1
      %p128 = por %p126, %p127
      %p129 = scmp.ne.s32.totalorder %s121, %s124
      %p130 = scmp.eq.s32.totalorder %s22, 0
      %p131 = por %p129, %p130
      %p132 = scmp.ne.s32.totalorder %s121, %s124
      %p133 = scmp.eq.s32.totalorder %s27, 1
      %p134 = por %p132, %p133
      %p135 = scmp.ne.s32.totalorder %s124, %s125
      %p136 = scmp.eq.s32.totalorder %s27, 0
      %p137 = por %p135, %p136
      %p138 = scmp.ne.s32.totalorder %s124, %s125
      %p139 = scmp.eq.s32.totalorder %s28, 1
      %p140 = por %p138, %p139
      %p142 = scmp.ne.s32.totalorder %s125, %s141
      %p143 = scmp.eq.s32.totalorder %s28, 0
      %p144 = por %p142, %p143
      %s145 = ssub.s32 %s29, %s48
      %s146 = ssub.s32 %s30, %s44
      %s147 = sor.u32 %s145, %s146
      %p148 = scmp.eq.s32.totalorder %s147, 0
      %s150 = sadd.s32 %s149, 1
      %s151 = scalar_select %p148, %s149, %s150
      %p154 = pneg %p148
      %p155 = scmp.eq.s32.totalorder %s22, 1
      %p156 = por %p154, %p155
      %p157 = scmp.ne.s32.totalorder %s149, %s152
      %p158 = scmp.eq.s32.totalorder %s22, 0
      %p159 = por %p157, %p158
      %p160 = scmp.ne.s32.totalorder %s149, %s152
      %p161 = scmp.eq.s32.totalorder %s27, 1
      %p162 = por %p160, %p161
      %p163 = scmp.ne.s32.totalorder %s152, %s153
      %p164 = scmp.eq.s32.totalorder %s27, 0
      %p165 = por %p163, %p164
      %p166 = scmp.ne.s32.totalorder %s152, %s153
      %p167 = scmp.eq.s32.totalorder %s28, 1
      %p168 = por %p166, %p167
      %p170 = scmp.ne.s32.totalorder %s153, %s169
      %p171 = scmp.eq.s32.totalorder %s28, 0
      %p172 = por %p170, %p171
      %p173 = scmp.le.s32.totalorder 1, %s22
      %p174 = scmp.lt.s32.totalorder %s22, 3
      %p175 = pnand %p173, %p174
      %p176 = pneg %p175
      // Predicated region
      $region9: #{tpu_custom_call.1} parent=5 // pred_check
        _
      $region10: #{tpu_custom_call.1} parent=5 // pred_check_branch
        %178 = sbr.rel (%p175) target = $region12
      $region11: #{tpu_custom_call.1} parent=5 // pred_region
        %s179 = ssub.s32 %s22, 1
      $region12: #{tpu_custom_call.1} parent=5 // pred_fallthru
        _
      %p180 = scmp.lt.s32.totalorder %s22, 2
      // Predicated region
      $region13: #{tpu_custom_call.1} parent=5 // pred_check
        %p181 = pneg %p180
      $region14: #{tpu_custom_call.1} parent=5 // pred_check_branch
        %183 = sbr.rel (%p181) target = $region16
      $region15: #{tpu_custom_call.1} parent=5 // pred_region
        // Predicated region
        $region17: #{tpu_custom_call.1} parent=15 // pred_check
          %p184 = pneg %p69
        $region18: #{tpu_custom_call.1} parent=15 // pred_check_branch
          %186 = sbr.rel (%p184) target = $region20
        $region19: #{tpu_custom_call.1} parent=15 // pred_region
          %s187 = sand.u32 %s59, 1
          %s188 = scalar_lea.sflag [#allocation3], %s187
          %s189 = sand.u32 %s59, 1
          %s190 = smul.addr %s189, 8
          %s191 = scalar_lea.vmem [#allocation2], %s190
          %s192 = sadd.s32 %s30, %s31
          %p193 = scmp.lt.s32.totalorder %s192, 0
          %s194 = scalar_select %p193, %s192, 0
          %s196 = ssub.s32 128, 128
          %197 = vsyncadd %s188, %s196
          %s198 = sadd.s32 %s194, %s29
          %s199 = smul.addr %s198, 128
          %s200 = scalar_lea.hbm %s0, %s199
          %s202 = sshll.u32 %s191, 4
          %s203 = int_to_ptr.vmem [resolvable:$true] %s202
          %205 = dma.hbm_to_vmem [thread:$0]  %s200, 128, %s203, %s188
        $region20: #{tpu_custom_call.1} parent=15 // pred_fallthru
          _
        // Predicated region
        $region21: #{tpu_custom_call.1} parent=15 // pred_check
          %p206 = pneg %p103
        $region22: #{tpu_custom_call.1} parent=15 // pred_check_branch
          %208 = sbr.rel (%p206) target = $region24
        $region23: #{tpu_custom_call.1} parent=15 // pred_region
          %s209 = sand.u32 %s93, 1
          %s210 = scalar_lea.sflag [#allocation6], %s209
          %s211 = sand.u32 %s93, 1
          %s212 = smul.addr %s211, 8
          %s213 = scalar_lea.vmem [#allocation5], %s212
          %s214 = sadd.s32 %s30, %s31
          %p215 = scmp.lt.s32.totalorder %s214, 0
          %s216 = scalar_select %p215, %s214, 0
          %s218 = ssub.s32 128, 128
          %219 = vsyncadd %s210, %s218
          %s220 = sadd.s32 %s216, %s29
          %s221 = smul.addr %s220, 128
          %s222 = scalar_lea.hbm %s1, %s221
          %s224 = sshll.u32 %s213, 4
          %s225 = int_to_ptr.vmem [resolvable:$true] %s224
          %227 = dma.hbm_to_vmem [thread:$0]  %s222, 128, %s225, %s210
        $region24: #{tpu_custom_call.1} parent=15 // pred_fallthru
          _
      $region16: #{tpu_custom_call.1} parent=5 // pred_fallthru
        _
      %p228 = scmp.le.s32.totalorder 1, %s22
      %p229 = scmp.lt.s32.totalorder %s22, 3
      %p230 = pnand %p228, %p229
      %p231 = pneg %p230
      // Predicated region
      $region25: #{tpu_custom_call.1} parent=5 // pred_check
        _
      $region26: #{tpu_custom_call.1} parent=5 // pred_check_branch
        %233 = sbr.rel (%p230) target = $region28
      $region27: #{tpu_custom_call.1} parent=5 // pred_region
        %s234 = ssub.s32 %s22, 1
        %s235 = sand.u32 %s62, 1
        %s236 = scalar_lea.sflag [#allocation3], %s235
        %s237 = sand.u32 %s62, 1
        %s238 = smul.addr %s237, 8
        %s239 = scalar_lea.vmem [#allocation2], %s238
        // Predicated region
        $region29: #{tpu_custom_call.1} parent=27 // pred_check
          %p240 = pneg %p75
        $region30: #{tpu_custom_call.1} parent=27 // pred_check_branch
          %242 = sbr.rel (%p240) target = $region32
        $region31: #{tpu_custom_call.1} parent=27 // pred_region
          %243 = dma.done %s236, 128
        $region32: #{tpu_custom_call.1} parent=27 // pred_fallthru
          _
        %s244 = sand.u32 %s96, 1
        %s245 = scalar_lea.sflag [#allocation6], %s244
        %s246 = sand.u32 %s96, 1
        %s247 = smul.addr %s246, 8
        %s248 = scalar_lea.vmem [#allocation5], %s247
        // Predicated region
        $region33: #{tpu_custom_call.1} parent=27 // pred_check
          %p249 = pneg %p109
        $region34: #{tpu_custom_call.1} parent=27 // pred_check_branch
          %251 = sbr.rel (%p249) target = $region36
        $region35: #{tpu_custom_call.1} parent=27 // pred_region
          %252 = dma.done %s245, 128
        $region36: #{tpu_custom_call.1} parent=27 // pred_fallthru
          _
        %s253 = sand.u32 %s62, 1
        %s254 = scalar_lea.sflag [#allocation3], %s253
        %s255 = sand.u32 %s62, 1
        %s256 = smul.addr %s255, 8
        %s257 = scalar_lea.vmem [#allocation2], %s256
        %p258 = pneg %p75
        %p259 = pneg %p72
        %s260 = sand.u32 %s96, 1
        %s261 = scalar_lea.sflag [#allocation6], %s260
        %s262 = sand.u32 %s96, 1
        %s263 = smul.addr %s262, 8
        %s264 = scalar_lea.vmem [#allocation5], %s263
        %p265 = pneg %p109
        %p266 = pneg %p106
        %p267 = pneg %p137
        %p268 = pneg %p134
        %s269 = sand.u32 %s124, 1
        %s270 = scalar_lea.sflag [#allocation4], %s269
        %s271 = sand.u32 %s124, 1
        %s272 = smul.addr %s271, 8
        %s273 = scalar_lea.vmem [#allocation7], %s272
        %p274 = pneg %p165
        %p275 = pneg %p162
        %s276 = sand.u32 %s152, 1
        %s277 = scalar_lea.sflag [#allocation9], %s276
        %s278 = sand.u32 %s152, 1
        %s279 = smul.addr %s278, 8
        %s280 = scalar_lea.vmem [#allocation8], %s279
        %s281 = sadd.s32 %s33, %s34
        %p282 = scmp.lt.s32.totalorder %s281, 0
        %s283 = scalar_select %p282, %s281, 0
        %s284 = sadd.s32 %s33, %s34
        %p285 = scmp.lt.s32.totalorder %s284, 0
        %s286 = scalar_select %p285, %s284, 0
        %p287 = scmp.eq.s32.totalorder %s34, 0
        // Predicated region
        $region37: #{tpu_custom_call.1} parent=27 // pred_check
          %p288 = pneg %p287
        $region38: #{tpu_custom_call.1} parent=27 // pred_check_branch
          %290 = sbr.rel (%p288) target = $region40
        $region39: #{tpu_custom_call.1} parent=27 // pred_region
          %291 = vst [vmem:[%s273] sm:$0xff] 0.0
          %292 = vst [vmem:[%s280] sm:$0xff] 0.0
        $region40: #{tpu_custom_call.1} parent=27 // pred_fallthru
          _
        %v293 = vld [vmem:[%s239] sm:$0xff]
        %v294 = vld [vmem:[%s248] sm:$0xff]
        %v295 = vmul.f32 %v293, %v294
        %v296 = vadd.f32 %v293, %v294
        %v297 = vld [vmem:[%s273] sm:$0xff]
        %v298 = vadd.f32 %v295, 0.0
        %v299 = vadd.f32 %v297, %v298
        %300 = vst [vmem:[%s273] sm:$0xff] %v299
        %v301 = vld [vmem:[%s280] sm:$0xff]
        %v302 = vadd.f32 %v296, 0.0
        %v303 = vadd.f32 %v301, %v302
        %304 = vst [vmem:[%s280] sm:$0xff] %v303
        %s305 = sand.u32 %s124, 1
        %s306 = scalar_lea.sflag [#allocation4], %s305
        %s307 = sand.u32 %s124, 1
        %s308 = smul.addr %s307, 8
        %s309 = scalar_lea.vmem [#allocation7], %s308
        %s310 = sand.u32 %s152, 1
        %s311 = scalar_lea.sflag [#allocation9], %s310
        %s312 = sand.u32 %s152, 1
        %s313 = smul.addr %s312, 8
        %s314 = scalar_lea.vmem [#allocation8], %s313
        // Predicated region
        $region41: #{tpu_custom_call.1} parent=27 // pred_check
          %p315 = pneg %p134
        $region42: #{tpu_custom_call.1} parent=27 // pred_check_branch
          %317 = sbr.rel (%p315) target = $region44
        $region43: #{tpu_custom_call.1} parent=27 // pred_region
          %s319 = ssub.s32 128, 128
          %320 = vsyncadd %s306, %s319
          %s321 = sadd.s32 %s33, %s32
          %s322 = smul.addr %s321, 128
          %s323 = scalar_lea.hbm %s2, %s322
          %s325 = sshll.u32 %s309, 4
          %s326 = int_to_ptr.vmem [resolvable:$true] %s325
          %328 = dma.vmem_to_hbm [thread:$0]  %s326, 128, %s323, %s306
        $region44: #{tpu_custom_call.1} parent=27 // pred_fallthru
          _
        // Predicated region
        $region45: #{tpu_custom_call.1} parent=27 // pred_check
          %p329 = pneg %p162
        $region46: #{tpu_custom_call.1} parent=27 // pred_check_branch
          %331 = sbr.rel (%p329) target = $region48
        $region47: #{tpu_custom_call.1} parent=27 // pred_region
          %s333 = ssub.s32 128, 128
          %334 = vsyncadd %s311, %s333
          %s335 = sadd.s32 %s33, %s32
          %s336 = smul.addr %s335, 128
          %s337 = scalar_lea.hbm %s3, %s336
          %s339 = sshll.u32 %s314, 4
          %s340 = int_to_ptr.vmem [resolvable:$true] %s339
          %342 = dma.vmem_to_hbm [thread:$0]  %s340, 128, %s337, %s311
        $region48: #{tpu_custom_call.1} parent=27 // pred_fallthru
          _
      $region28: #{tpu_custom_call.1} parent=5 // pred_fallthru
        _
      %p343 = scmp.le.s32.totalorder 2, %s22
      // Predicated region
      $region49: #{tpu_custom_call.1} parent=5 // pred_check
        %p344 = pneg %p343
      $region50: #{tpu_custom_call.1} parent=5 // pred_check_branch
        %346 = sbr.rel (%p344) target = $region52
      $region51: #{tpu_custom_call.1} parent=5 // pred_region
        %s347 = ssub.s32 %s22, 2
        // Predicated region
        $region53: #{tpu_custom_call.1} parent=51 // pred_check
          %p348 = pneg %p140
        $region54: #{tpu_custom_call.1} parent=51 // pred_check_branch
          %350 = sbr.rel (%p348) target = $region56
        $region55: #{tpu_custom_call.1} parent=51 // pred_region
          %s351 = sand.u32 %s125, 1
          %s352 = scalar_lea.sflag [#allocation4], %s351
          %s353 = sand.u32 %s125, 1
          %s354 = smul.addr %s353, 8
          %s355 = scalar_lea.vmem [#allocation7], %s354
          %356 = dma.done %s352, 128
        $region56: #{tpu_custom_call.1} parent=51 // pred_fallthru
          _
        // Predicated region
        $region57: #{tpu_custom_call.1} parent=51 // pred_check
          %p357 = pneg %p168
        $region58: #{tpu_custom_call.1} parent=51 // pred_check_branch
          %359 = sbr.rel (%p357) target = $region60
        $region59: #{tpu_custom_call.1} parent=51 // pred_region
          %s360 = sand.u32 %s153, 1
          %s361 = scalar_lea.sflag [#allocation9], %s360
          %s362 = sand.u32 %s153, 1
          %s363 = smul.addr %s362, 8
          %s364 = scalar_lea.vmem [#allocation8], %s363
          %365 = dma.done %s361, 128
        $region60: #{tpu_custom_call.1} parent=51 // pred_fallthru
          _
      $region52: #{tpu_custom_call.1} parent=5 // pred_fallthru
        _
    $region6: #{tpu_custom_call.1} parent=1 // loop_footer
      %s26 = sadd.s32 1, %s22
    $region7: #{tpu_custom_call.1} parent=1 // loop_footer_branch
      %21 = sbr.rel target = $region3
    $region8: #{tpu_custom_call.1} parent=1 // loop_exit
      _
    %366 = vsyncpa [#allocation3], 1
    %s367 = scalar_lea.sflag [#allocation3], 1
    %368 = vsyncpa %s367, 1
    %369 = vsyncpa [#allocation6], 1
    %s370 = scalar_lea.sflag [#allocation6], 1
    %371 = vsyncpa %s370, 1
    %372 = vsyncpa [#allocation4], 1
    %s373 = scalar_lea.sflag [#allocation4], 1
    %374 = vsyncpa %s373, 1
    %375 = vsyncpa [#allocation9], 1
    %s376 = scalar_lea.sflag [#allocation9], 1
    %377 = vsyncpa %s376, 1

</llo_original>
